<compile_context>
chip_gen: v6e
topology: v6e:2x2x1
jax: 0.10.0
libtpu: 0.0.40
codegen_flags: <defaults>
</compile_context>

<pallas_src>
import jax
import jax.numpy as jnp
from jax import lax
from jax.experimental import pallas as pl
from jax.experimental.pallas import tpu as pltpu


def _round_up(x, m):
    return ((x + m - 1) // m) * m


# Contract x (tm, tk) against the weight in its native nn.Linear (N, K) layout
# -> tile (tn, tk); contraction on the minor (K) axis of both operands.  This
# is the same NT pattern as flash-attention's q @ k^T and maps to the MXU's
# transposed-operand matmul — no wrapper-side or per-step weight transpose.
# TODO(synk): confirm with a bundle dump that Mosaic emits no per-step XLU
# transpose of the W tile on the target chip; if it does, pre-transpose the
# static weight to (K, N) once at parameter-setup time and use ((1,),(0,)).
_DN = (((1,), (1,)), ((), ()))

_VMEM_BUDGET = 36 * 1024 * 1024   # kernel double-buffered footprint budget
_VMEM_LIMIT = 48 * 1024 * 1024    # scoped-VMEM override (v5e default is 16 MiB)
_TM_CAP = 256
_TN_CAP = 2048
_TK_CAP = 1024


def _fully_kernel_single_k(x_ref, w_ref, b_ref, o_ref):
    # Whole K resident: no accumulator scratch, no pl.when phases.
    acc = lax.dot_general(x_ref[...], w_ref[...], dimension_numbers=_DN,
                          preferred_element_type=jnp.float32)
    o_ref[...] = jnp.maximum(acc + b_ref[...], 0.0).astype(o_ref.dtype)


def _fully_kernel_multi_k(x_ref, w_ref, b_ref, o_ref, acc_ref):
    k = pl.program_id(2)

    @pl.when(k == 0)
    def _():
        acc_ref[...] = jnp.zeros_like(acc_ref)

    acc_ref[...] += lax.dot_general(x_ref[...], w_ref[...],
                                    dimension_numbers=_DN,
                                    preferred_element_type=jnp.float32)

    @pl.when(k == pl.num_programs(2) - 1)
    def _():
        # bias add + ReLU fused into the finalize step
        o_ref[...] = jnp.maximum(acc_ref[...] + b_ref[...], 0.0).astype(o_ref.dtype)


def _pick_tiles(M, N, K, itemsize):
    """Pick (tm, tn, tk) under the VMEM buffer budget (f32-safe on v7x)."""
    m_align = max(8, 32 // itemsize)            # 8 f32, 16 bf16, 32 int8/fp8
    tm = min(_round_up(M, m_align), _TM_CAP)
    n128 = _round_up(N, 128)
    k128 = _round_up(K, 128)

    def fits(tn, tk, multi_k):
        # 2x double-buffered x/W/bias/out tiles (+ resident f32 accumulator).
        bufs = (2 * tm * tk + 2 * tn * tk + 2 * tn + 2 * tm * tn) * itemsize
        if multi_k:
            bufs += tm * tn * 4
        return bufs <= _VMEM_BUDGET

    # 1) Phase-free path: whole K in one block.
    tk = k128
    tn = min(n128, _TN_CAP)
    while tn >= 128 and not fits(tn, tk, False):
        tn -= 128
    if tn < 128:
        # 2) K too large to keep resident: tiled reduction + f32 accumulator.
        tk = min(k128, _TK_CAP)
        tn = min(n128, _TN_CAP)
        while tn > 128 and not fits(tn, tk, True):
            tn -= 128

    # Keep >=2 parallel grid blocks so both v7x TensorCores get work
    # (harmless on single-TC v5e/v6e).
    if pl.cdiv(M, tm) * pl.cdiv(N, tn) == 1 and n128 >= 256:
        tn = _round_up(n128 // 2, 128)

    return tm, tn, tk


def fully_layer(x, weight, bias):
    """y = relu(x @ weight.T + bias). weight is (N, K) like torch.nn.Linear."""
    M, K = x.shape
    N, Kw = weight.shape
    assert Kw == K and bias.shape == (N,)
    itemsize = jnp.dtype(x.dtype).itemsize

    tm, tn, tk = _pick_tiles(M, N, K, itemsize)

    # Only K needs explicit zero padding (OOB reads along K would corrupt
    # valid outputs); ragged M/N edge blocks are masked by Pallas.  For
    # 128-aligned K (e.g. the module default 4096) this is a no-op; for a
    # static nn.Linear weight, pad once at parameter-setup time instead.
    Kp = _round_up(K, tk)
    if Kp != K:
        x = jnp.pad(x, ((0, 0), (0, Kp - K)))
        weight = jnp.pad(weight, ((0, 0), (0, Kp - K)))
    b2 = bias.reshape(1, N)

    mt, nt, kt = pl.cdiv(M, tm), pl.cdiv(N, tn), Kp // tk

    cost = pl.CostEstimate(
        flops=2 * M * N * K,
        transcendentals=0,
        bytes_accessed=itemsize * (M * Kp + N * Kp + M * N + N))

    if kt == 1:
        grid_spec = pltpu.PrefetchScalarGridSpec(
            num_scalar_prefetch=0,
            grid=(mt, nt),
            in_specs=[
                pl.BlockSpec((tm, tk), lambda i, j: (i, 0)),   # x tile
                pl.BlockSpec((tn, tk), lambda i, j: (j, 0)),   # W tile (N, K)
                pl.BlockSpec((1, tn), lambda i, j: (0, j)),    # bias tile
            ],
            out_specs=pl.BlockSpec((tm, tn), lambda i, j: (i, j)))
        kernel = _fully_kernel_single_k
        sem = ("parallel", "parallel")
    else:
        grid_spec = pltpu.PrefetchScalarGridSpec(
            num_scalar_prefetch=0,
            grid=(mt, nt, kt),                                 # K last
            in_specs=[
                pl.BlockSpec((tm, tk), lambda i, j, k: (i, k)),  # x tile
                pl.BlockSpec((tn, tk), lambda i, j, k: (j, k)),  # W tile (N,K)
                pl.BlockSpec((1, tn), lambda i, j, k: (0, j)),   # k-invariant bias
            ],
            out_specs=pl.BlockSpec((tm, tn), lambda i, j, k: (i, j)),
            scratch_shapes=[pltpu.VMEM((tm, tn), jnp.float32)])
        kernel = _fully_kernel_multi_k
        sem = ("parallel", "parallel", "arbitrary")

    return pl.pallas_call(
        kernel,
        out_shape=jax.ShapeDtypeStruct((M, N), x.dtype),
        grid_spec=grid_spec,
        compiler_params=pltpu.CompilerParams(
            dimension_semantics=sem, vmem_limit_bytes=_VMEM_LIMIT),
        cost_estimate=cost,
    )(x, weight, b2)


if __name__ == "__main__":
    # Small shapes consistent with the module (Linear in->out), f32 params.
    batch, in_features, out_features = 8, 256, 256

    key = jax.random.PRNGKey(0)
    kx, kw, kx2, kw2, kb2 = jax.random.split(key, 5)

    # Deterministic init matching _initialize_weights:
    #   nn.init.normal_(weight, 0, 0.01); nn.init.constant_(bias, 0)
    weight = 0.01 * jax.random.normal(kw, (out_features, in_features), jnp.float32)
    bias = jnp.zeros((out_features,), jnp.float32)
    x = jax.random.normal(kx, (batch, in_features), jnp.float32)

    y = jax.block_until_ready(fully_layer(x, weight, bias))
    y_ref = jnp.maximum(x @ weight.T + bias, 0.0)
    assert y.shape == (batch, out_features)
    assert jnp.allclose(y, y_ref, atol=1e-4, rtol=1e-4)

    # Second check: non-aligned dims -> explicit K zero-padding + ragged M/N
    # edge blocks, and a nonzero bias to exercise the bias-add path.
    b2, k2, n2 = 5, 300, 200
    w2 = 0.01 * jax.random.normal(kw2, (n2, k2), jnp.float32)
    bi2 = 0.01 * jax.random.normal(kb2, (n2,), jnp.float32)
    x2 = jax.random.normal(kx2, (b2, k2), jnp.float32)
    y2 = jax.block_until_ready(fully_layer(x2, w2, bi2))
    y2_ref = jnp.maximum(x2 @ w2.T + bi2, 0.0)
    assert y2.shape == (b2, n2)
    assert jnp.allclose(y2, y2_ref, atol=1e-4, rtol=1e-4)

    print("KERNEL_OK")
</pallas_src>

<mosaic_0001>
module attributes {stable_mosaic.version = 11 : i64} {
  func.func @_fully_kernel_single_k(%arg0: i32, %arg1: i32, %arg2: memref<8x256xf32, #tpu.memory_space<vmem>>, %arg3: memref<128x256xf32, #tpu.memory_space<vmem>>, %arg4: memref<1x128xf32, #tpu.memory_space<vmem>>, %arg5: memref<8x128xf32, #tpu.memory_space<vmem>>) attributes {dimension_semantics = [#tpu.dimension_semantics<parallel>, #tpu.dimension_semantics<parallel>], iteration_bounds = array<i64: 1, 2>, scalar_prefetch = 0 : i64, scratch_operands = 0 : i64, tpu.core_type = #tpu.core_type<tc>, window_params = [{transform_indices = @transform_0, window_bounds = array<i64: 8, 256>}, {transform_indices = @transform_1, window_bounds = array<i64: 128, 256>}, {transform_indices = @transform_2, window_bounds = array<i64: 1, 128>}, {transform_indices = @transform_3, window_bounds = array<i64: 8, 128>}]} {
    %c0 = arith.constant 0 : index
    %c0_0 = arith.constant 0 : index
    %0 = vector.load %arg2[%c0, %c0_0] : memref<8x256xf32, #tpu.memory_space<vmem>>, vector<8x256xf32>
    %c0_1 = arith.constant 0 : index
    %c0_2 = arith.constant 0 : index
    %1 = vector.load %arg3[%c0_1, %c0_2] : memref<128x256xf32, #tpu.memory_space<vmem>>, vector<128x256xf32>
    %cst = arith.constant dense<0.000000e+00> : vector<8x128xf32>
    %2 = tpu.matmul %0, %1, %cst {dimension_numbers = #tpu.dot_dimension_numbers<[1], [1], [0], [0], [0, 0, 1, 0], [], []>} : vector<8x256xf32>, vector<128x256xf32>, vector<8x128xf32> -> vector<8x128xf32>
    %c0_3 = arith.constant 0 : index
    %c0_4 = arith.constant 0 : index
    %3 = vector.load %arg4[%c0_3, %c0_4] : memref<1x128xf32, #tpu.memory_space<vmem>>, vector<1x128xf32>
    %4 = vector.broadcast %3 : vector<1x128xf32> to vector<8x128xf32>
    %5 = arith.addf %2, %4 : vector<8x128xf32>
    %cst_5 = arith.constant 0.000000e+00 : f32
    %6 = vector.broadcast %cst_5 : f32 to vector<8x128xf32>
    %7 = arith.maximumf %5, %6 : vector<8x128xf32>
    %c0_6 = arith.constant 0 : index
    %c0_7 = arith.constant 0 : index
    %8 = vector.load %arg5[%c0_6, %c0_7] : memref<8x128xf32, #tpu.memory_space<vmem>>, vector<8x128xf32>
    tpu.vector_store %arg5[%c0_6, %c0_7], %7 {strides = array<i32>} : memref<8x128xf32, #tpu.memory_space<vmem>>, vector<8x128xf32>,
    return
  }
  func.func @transform_0(%arg0: i32, %arg1: i32) -> (i32, i32) {
    %c0_i32 = arith.constant 0 : i32
    %c0_i32_0 = arith.constant 0 : i32
    return %arg0, %c0_i32 : i32, i32
  }
  func.func @transform_1(%arg0: i32, %arg1: i32) -> (i32, i32) {
    %c0_i32 = arith.constant 0 : i32
    %c0_i32_0 = arith.constant 0 : i32
    return %arg1, %c0_i32 : i32, i32
  }
  func.func @transform_2(%arg0: i32, %arg1: i32) -> (i32, i32) {
    %c0_i32 = arith.constant 0 : i32
    %c0_i32_0 = arith.constant 0 : i32
    return %c0_i32, %arg1 : i32, i32
  }
  func.func @transform_3(%arg0: i32, %arg1: i32) -> (i32, i32) {
    %c0_i32 = arith.constant 0 : i32
    return %arg0, %arg1 : i32, i32
  }
}

</mosaic_0001>

<llo_original>
// kernel: tpu_custom_call.1
$region0: #{tpu_custom_call.1}
  #allocation0 [shape = 'u32[]', space=smem, size = 0x4, offset = 0x4, fixed_abs, tag = 'smem constant byte address 0x4 - core index']
  #allocation1 [shape = 'u32[144,128]{1,0:T(1,128)}', space=vmem, size = 0x12000, scoped, tag = 'internal scratch']
  %s0 = inlined_call_operand.hbm [shape: f32[8,256], index: 0, kind: input, shape index: {}]
  %s1 = inlined_call_operand.hbm [shape: f32[256,256], index: 1, kind: input, shape index: {}]
  %s2 = inlined_call_operand.vmem [shape: f32[1,256], index: 2, kind: input, shape index: {}]
  %s3 = inlined_call_operand.hbm [shape: f32[8,256], index: 3, kind: output, shape index: {}]
  %s4 = sld [smem:[#allocation0]]
  $region53: #{tpu_custom_call.1} parent=0
    _
  %s6 = ssub.s32 1, %s4
  %s7 = scalar_select 0, %s6, %s4
  $region1: #{tpu_custom_call.1} parent=0
    #allocation2 [shape = 'u8[8192]{0}', space=vmem, size = 0x2000, scoped, tag = 'input window, operand 0, single buffered']
    #allocation3 [shape = 's32[2]{0}', space=sflag, size = 0x8, scoped, tag = 'scoped memory for tpu_custom_call.1']
    #allocation4 [shape = 's32[2]{0}', space=sflag, size = 0x8, scoped, tag = 'scoped memory for tpu_custom_call.1']
    #allocation5 [shape = 'u8[262144]{0}', space=vmem, size = 0x40000, scoped, tag = 'input window, operand 1']
    #allocation6 [shape = 's32[2]{0}', space=sflag, size = 0x8, scoped, tag = 'scoped memory for tpu_custom_call.1']
    #allocation7 [shape = 'u8[8192]{0}', space=vmem, size = 0x2000, scoped, tag = 'output window, operand 0']
    %8 = vsyncpa [#allocation3], 0
    %9 = vsyncpa [#allocation6], 0
    %s10 = scalar_lea.sflag [#allocation6], 1
    %11 = vsyncpa %s10, 0
    %12 = vsyncpa [#allocation4], 0
    %s13 = scalar_lea.sflag [#allocation4], 1
    %14 = vsyncpa %s13, 0
    loop: start=0, step=1, limit=4
    $region2: #{tpu_custom_call.1} parent=1 // loop_pre_header
      _
    $region3: #{tpu_custom_call.1} parent=1 // loop_header
      %s16 = sphi 0, %s20
      %p17 = scmp.ge.s32.totalorder %s16, 4
      %s23 = sphi 0, %s35
      %s24 = sphi 0, %s31
      %s25 = sphi 0, %s23
      %s26 = sphi 0, %s24
      %s27 = sphi 0, %s25
      %s28 = sphi 0, %s26
      %s38 = sphi 0, %s40
      %s41 = sphi 0, %s38
      %s42 = sphi 0, %s41
      %s58 = sphi 0, %s42
      %s64 = sphi 0, %s66
      %s67 = sphi 0, %s64
      %s68 = sphi 0, %s67
      %s84 = sphi 0, %s68
      %s90 = sphi 0, %s92
      %s93 = sphi 0, %s90
      %s94 = sphi 0, %s93
      %s110 = sphi 0, %s94
      %s118 = sphi 0, %s120
      %s121 = sphi 0, %s118
      %s122 = sphi 0, %s121
      %s138 = sphi 0, %s122
    $region4: #{tpu_custom_call.1} parent=1 // loop_header_branch
      %19 = sbr.rel (%p17) target = $region8
    $region5: #{tpu_custom_call.1} parent=1 // loop_body
      %s21 = ssub.s32 %s16, 1
      %s22 = ssub.s32 %s16, 2
      %s29 = sadd.s32 1, %s24
      %p30 = scmp.ge.s32.totalorder %s29, 2
      %s31 = scalar_select %p30, 0, %s29
      %s32 = sadd.s32 1, %s23
      %s33 = scalar_select %p30, %s32, %s23
      %p34 = scmp.ge.s32.totalorder %s33, 1
      %s35 = scalar_select %p34, 0, %s33
      %s36 = ssub.s32 %s23, %s35
      %p37 = scmp.eq.s32.totalorder %s36, 0
      %s39 = sadd.s32 %s38, 1
      %s40 = scalar_select %p37, %s38, %s39
      %p43 = pneg %p37
      %p44 = scmp.eq.s32.totalorder %s16, 1
      %p45 = por %p43, %p44
      %p46 = scmp.ne.s32.totalorder %s38, %s41
      %p47 = scmp.eq.s32.totalorder %s16, 0
      %p48 = por %p46, %p47
      %p49 = scmp.ne.s32.totalorder %s38, %s41
      %p50 = scmp.eq.s32.totalorder %s21, 1
      %p51 = por %p49, %p50
      %p52 = scmp.ne.s32.totalorder %s41, %s42
      %p53 = scmp.eq.s32.totalorder %s21, 0
      %p54 = por %p52, %p53
      %p55 = scmp.ne.s32.totalorder %s41, %s42
      %p56 = scmp.eq.s32.totalorder %s22, 1
      %p57 = por %p55, %p56
      %p59 = scmp.ne.s32.totalorder %s42, %s58
      %p60 = scmp.eq.s32.totalorder %s22, 0
      %p61 = por %p59, %p60
      %s62 = ssub.s32 %s24, %s31
      %p63 = scmp.eq.s32.totalorder %s62, 0
      %s65 = sadd.s32 %s64, 1
      %s66 = scalar_select %p63, %s64, %s65
      %p69 = pneg %p63
      %p70 = scmp.eq.s32.totalorder %s16, 1
      %p71 = por %p69, %p70
      %p72 = scmp.ne.s32.totalorder %s64, %s67
      %p73 = scmp.eq.s32.totalorder %s16, 0
      %p74 = por %p72, %p73
      %p75 = scmp.ne.s32.totalorder %s64, %s67
      %p76 = scmp.eq.s32.totalorder %s21, 1
      %p77 = por %p75, %p76
      %p78 = scmp.ne.s32.totalorder %s67, %s68
      %p79 = scmp.eq.s32.totalorder %s21, 0
      %p80 = por %p78, %p79
      %p81 = scmp.ne.s32.totalorder %s67, %s68
      %p82 = scmp.eq.s32.totalorder %s22, 1
      %p83 = por %p81, %p82
      %p85 = scmp.ne.s32.totalorder %s68, %s84
      %p86 = scmp.eq.s32.totalorder %s22, 0
      %p87 = por %p85, %p86
      %s88 = ssub.s32 %s24, %s31
      %p89 = scmp.eq.s32.totalorder %s88, 0
      %s91 = sadd.s32 %s90, 1
      %s92 = scalar_select %p89, %s90, %s91
      %p95 = pneg %p89
      %p96 = scmp.eq.s32.totalorder %s16, 1
      %p97 = por %p95, %p96
      %p98 = scmp.ne.s32.totalorder %s90, %s93
      %p99 = scmp.eq.s32.totalorder %s16, 0
      %p100 = por %p98, %p99
      %p101 = scmp.ne.s32.totalorder %s90, %s93
      %p102 = scmp.eq.s32.totalorder %s21, 1
      %p103 = por %p101, %p102
      %p104 = scmp.ne.s32.totalorder %s93, %s94
      %p105 = scmp.eq.s32.totalorder %s21, 0
      %p106 = por %p104, %p105
      %p107 = scmp.ne.s32.totalorder %s93, %s94
      %p108 = scmp.eq.s32.totalorder %s22, 1
      %p109 = por %p107, %p108
      %p111 = scmp.ne.s32.totalorder %s94, %s110
      %p112 = scmp.eq.s32.totalorder %s22, 0
      %p113 = por %p111, %p112
      %s114 = ssub.s32 %s23, %s35
      %s115 = ssub.s32 %s24, %s31
      %s116 = sor.u32 %s114, %s115
      %p117 = scmp.eq.s32.totalorder %s116, 0
      %s119 = sadd.s32 %s118, 1
      %s120 = scalar_select %p117, %s118, %s119
      %p123 = pneg %p117
      %p124 = scmp.eq.s32.totalorder %s16, 1
      %p125 = por %p123, %p124
      %p126 = scmp.ne.s32.totalorder %s118, %s121
      %p127 = scmp.eq.s32.totalorder %s16, 0
      %p128 = por %p126, %p127
      %p129 = scmp.ne.s32.totalorder %s118, %s121
      %p130 = scmp.eq.s32.totalorder %s21, 1
      %p131 = por %p129, %p130
      %p132 = scmp.ne.s32.totalorder %s121, %s122
      %p133 = scmp.eq.s32.totalorder %s21, 0
      %p134 = por %p132, %p133
      %p135 = scmp.ne.s32.totalorder %s121, %s122
      %p136 = scmp.eq.s32.totalorder %s22, 1
      %p137 = por %p135, %p136
      %p139 = scmp.ne.s32.totalorder %s122, %s138
      %p140 = scmp.eq.s32.totalorder %s22, 0
      %p141 = por %p139, %p140
      %p142 = scmp.le.s32.totalorder 1, %s16
      %p143 = scmp.lt.s32.totalorder %s16, 3
      %p144 = pnand %p142, %p143
      %p145 = pneg %p144
      // Predicated region
      $region9: #{tpu_custom_call.1} parent=5 // pred_check
        _
      $region10: #{tpu_custom_call.1} parent=5 // pred_check_branch
        %147 = sbr.rel (%p144) target = $region12
      $region11: #{tpu_custom_call.1} parent=5 // pred_region
        %s148 = ssub.s32 %s16, 1
        // Predicated region
        $region13: #{tpu_custom_call.1} parent=11 // pred_check
          %p149 = pneg %p54
        $region14: #{tpu_custom_call.1} parent=11 // pred_check_branch
          %151 = sbr.rel (%p149) target = $region16
        $region15: #{tpu_custom_call.1} parent=11 // pred_region
          %s153 = ssub.s32 256, 256
          %154 = vsyncadd [#allocation3], %s153
          %s155 = smul.addr %s25, 2
          %s156 = smul.addr %s155, 128
          %s157 = scalar_lea.hbm %s0, %s156
          %s159 = sshll.u32 [#allocation2], 4
          %s160 = int_to_ptr.vmem [resolvable:$true] %s159
          %162 = dma.hbm_to_vmem [thread:$0]  %s157, 256, %s160, [#allocation3]
        $region16: #{tpu_custom_call.1} parent=11 // pred_fallthru
          _
      $region12: #{tpu_custom_call.1} parent=5 // pred_fallthru
        _
      %p163 = scmp.lt.s32.totalorder %s16, 2
      // Predicated region
      $region17: #{tpu_custom_call.1} parent=5 // pred_check
        %p164 = pneg %p163
      $region18: #{tpu_custom_call.1} parent=5 // pred_check_branch
        %166 = sbr.rel (%p164) target = $region20
      $region19: #{tpu_custom_call.1} parent=5 // pred_region
        // Predicated region
        $region21: #{tpu_custom_call.1} parent=19 // pred_check
          %p167 = pneg %p74
        $region22: #{tpu_custom_call.1} parent=19 // pred_check_branch
          %169 = sbr.rel (%p167) target = $region24
        $region23: #{tpu_custom_call.1} parent=19 // pred_region
          %s170 = sand.u32 %s64, 1
          %s171 = scalar_lea.sflag [#allocation6], %s170
          %s172 = sand.u32 %s64, 1
          %s173 = smul.addr %s172, 256
          %s174 = scalar_lea.vmem [#allocation5], %s173
          %s175 = smul.u32 16, %s24
          %s177 = ssub.s32 4096, 4096
          %178 = vsyncadd %s171, %s177
          %s179 = smul.addr %s175, 2
          %s180 = smul.addr %s179, 128
          %s181 = scalar_lea.hbm %s1, %s180
          %s182 = sshll.u32 %s174, 4
          %s183 = int_to_ptr.vmem [resolvable:$true] %s182
          %188 = dma.hbm_to_vmem [thread:$0]  %s181, 4096, %s183, %s171, 256, 256, 16
        $region24: #{tpu_custom_call.1} parent=19 // pred_fallthru
          _
        // Predicated region
        $region25: #{tpu_custom_call.1} parent=19 // pred_check
          %p189 = pneg %p100
        $region26: #{tpu_custom_call.1} parent=19 // pred_check_branch
          %191 = sbr.rel (%p189) target = $region28
        $region27: #{tpu_custom_call.1} parent=19 // pred_region
          %p192 = scmp.lt.s32.totalorder %s24, 1
          %s193 = scalar_select %p192, %s24, 1
          %s194 = scalar_lea.vmem %s2, %s193
        $region28: #{tpu_custom_call.1} parent=19 // pred_fallthru
          _
      $region20: #{tpu_custom_call.1} parent=5 // pred_fallthru
        _
      %p195 = scmp.le.s32.totalorder 1, %s16
      %p196 = scmp.lt.s32.totalorder %s16, 3
      %p197 = pnand %p195, %p196
      %p198 = pneg %p197
      // Predicated region
      $region29: #{tpu_custom_call.1} parent=5 // pred_check
        _
      $region30: #{tpu_custom_call.1} parent=5 // pred_check_branch
        %200 = sbr.rel (%p197) target = $region32
      $region31: #{tpu_custom_call.1} parent=5 // pred_region
        %s201 = ssub.s32 %s16, 1
        // Predicated region
        $region33: #{tpu_custom_call.1} parent=31 // pred_check
          %p202 = pneg %p54
        $region34: #{tpu_custom_call.1} parent=31 // pred_check_branch
          %204 = sbr.rel (%p202) target = $region36
        $region35: #{tpu_custom_call.1} parent=31 // pred_region
          %205 = dma.done [#allocation3], 256
        $region36: #{tpu_custom_call.1} parent=31 // pred_fallthru
          _
        %s206 = sand.u32 %s67, 1
        %s207 = scalar_lea.sflag [#allocation6], %s206
        %s208 = sand.u32 %s67, 1
        %s209 = smul.addr %s208, 256
        %s210 = scalar_lea.vmem [#allocation5], %s209
        // Predicated region
        $region37: #{tpu_custom_call.1} parent=31 // pred_check
          %p211 = pneg %p80
        $region38: #{tpu_custom_call.1} parent=31 // pred_check_branch
          %213 = sbr.rel (%p211) target = $region40
        $region39: #{tpu_custom_call.1} parent=31 // pred_region
          %214 = dma.done %s207, 4096
        $region40: #{tpu_custom_call.1} parent=31 // pred_fallthru
          _
        %p215 = pneg %p54
        %p216 = pneg %p51
        %s217 = sand.u32 %s67, 1
        %s218 = scalar_lea.sflag [#allocation6], %s217
        %s219 = sand.u32 %s67, 1
        %s220 = smul.addr %s219, 256
        %s221 = scalar_lea.vmem [#allocation5], %s220
        %p222 = pneg %p80
        %p223 = pneg %p77
        %p224 = scmp.lt.s32.totalorder %s26, 1
        %s225 = scalar_select %p224, %s26, 1
        %s226 = scalar_lea.vmem %s2, %s225
        %p227 = pneg %p106
        %p228 = pneg %p103
        %p229 = pneg %p134
        %p230 = pneg %p131
        %s231 = sand.u32 %s121, 1
        %s232 = scalar_lea.sflag [#allocation4], %s231
        %s233 = sand.u32 %s121, 1
        %s234 = smul.addr %s233, 8
        %s235 = scalar_lea.vmem [#allocation7], %s234
        %s236 = smul.u32 16, %s26
        %p237 = scmp.lt.s32.totalorder %s26, 1
        %s238 = scalar_select %p237, %s26, 1
        %s239 = scalar_lea.vmem %s2, %s238
        %v240 = vld [vmem:[#allocation2] sm:$0xff]
        %v241 = vld [vmem:[#allocation2 + $0x8] sm:$0xff]
        %v242 = vld [vmem:[%s210] sm:$0xff]
        %v243 = vld [vmem:[%s210 + $0x8] sm:$0xff]
        %v244 = vld [vmem:[%s210 + $0x10] sm:$0xff]
        %v245 = vld [vmem:[%s210 + $0x18] sm:$0xff]
        %v246 = vld [vmem:[%s210 + $0x20] sm:$0xff]
        %v247 = vld [vmem:[%s210 + $0x28] sm:$0xff]
        %v248 = vld [vmem:[%s210 + $0x30] sm:$0xff]
        %v249 = vld [vmem:[%s210 + $0x38] sm:$0xff]
        %v250 = vld [vmem:[%s210 + $0x40] sm:$0xff]
        %v251 = vld [vmem:[%s210 + $0x48] sm:$0xff]
        %v252 = vld [vmem:[%s210 + $0x50] sm:$0xff]
        %v253 = vld [vmem:[%s210 + $0x58] sm:$0xff]
        %v254 = vld [vmem:[%s210 + $0x60] sm:$0xff]
        %v255 = vld [vmem:[%s210 + $0x68] sm:$0xff]
        %v256 = vld [vmem:[%s210 + $0x70] sm:$0xff]
        %v257 = vld [vmem:[%s210 + $0x78] sm:$0xff]
        %v258 = vld [vmem:[%s210 + $0x80] sm:$0xff]
        %v259 = vld [vmem:[%s210 + $0x88] sm:$0xff]
        %v260 = vld [vmem:[%s210 + $0x90] sm:$0xff]
        %v261 = vld [vmem:[%s210 + $0x98] sm:$0xff]
        %v262 = vld [vmem:[%s210 + $0xa0] sm:$0xff]
        %v263 = vld [vmem:[%s210 + $0xa8] sm:$0xff]
        %v264 = vld [vmem:[%s210 + $0xb0] sm:$0xff]
        %v265 = vld [vmem:[%s210 + $0xb8] sm:$0xff]
        %v266 = vld [vmem:[%s210 + $0xc0] sm:$0xff]
        %v267 = vld [vmem:[%s210 + $0xc8] sm:$0xff]
        %v268 = vld [vmem:[%s210 + $0xd0] sm:$0xff]
        %v269 = vld [vmem:[%s210 + $0xd8] sm:$0xff]
        %v270 = vld [vmem:[%s210 + $0xe0] sm:$0xff]
        %v271 = vld [vmem:[%s210 + $0xe8] sm:$0xff]
        %v272 = vld [vmem:[%s210 + $0xf0] sm:$0xff]
        %v273 = vld [vmem:[%s210 + $0xf8] sm:$0xff]
        %v274 = vld [vmem:[%s239] sm:$0x1]
        %v276 = vlaneseq
        %v277 = vshrl.u32 %v276, 7
        %v278 = vsub.s32 0, %v277
        %v279 = vrot.slane %v274, %v278
        %281 = vmatprep.subr.mxu0 %v273
        %282 = vmatpush1.xpose.msra.mxu0 %v272
        %283 = vmatprep.subr.mxu0 %v271
        %284 = vmatpush1.xpose.msra.mxu0 %v270
        %285 = vmatprep.subr.mxu0 %v269
        %286 = vmatpush1.xpose.msra.mxu0 %v268
        %287 = vmatprep.subr.mxu0 %v267
        %288 = vmatpush1.xpose.msra.mxu0 %v266
        %289 = vmatprep.subr.mxu0 %v265
        %290 = vmatpush1.xpose.msra.mxu0 %v264
        %291 = vmatprep.subr.mxu0 %v263
        %292 = vmatpush1.xpose.msra.mxu0 %v262
        %293 = vmatprep.subr.mxu0 %v261
        %294 = vmatpush1.xpose.msra.mxu0 %v260
        %295 = vmatprep.subr.mxu0 %v259
        %296 = vmatpush1.xpose.msra.mxu0 %v258
        %297 = vmatprep.subr.mxu0 %v257
        %298 = vmatpush1.xpose.msra.mxu0 %v256
        %299 = vmatprep.subr.mxu0 %v255
        %300 = vmatpush1.xpose.msra.mxu0 %v254
        %301 = vmatprep.subr.mxu0 %v253
        %302 = vmatpush1.xpose.msra.mxu0 %v252
        %303 = vmatprep.subr.mxu0 %v251
        %304 = vmatpush1.xpose.msra.mxu0 %v250
        %305 = vmatprep.subr.mxu0 %v249
        %306 = vmatpush1.xpose.msra.mxu0 %v248
        %307 = vmatprep.subr.mxu0 %v247
        %308 = vmatpush1.xpose.msra.mxu0 %v246
        %309 = vmatprep.subr.mxu0 %v245
        %310 = vmatpush1.xpose.msra.mxu0 %v244
        %311 = vmatprep.subr.mxu0 %v243
        %312 = vmatpush1.xpose.msra.mxu0 %v242
        %313 = vmatprep.subr.mxu0 0.0
        %314 = vmatpush2.xpose.msra.mxu0 0.0
        %315 = vmatprep.subr.mxu0 0.0
        %316 = vmatpush2.xpose.msra.mxu0 0.0
        %317 = vmatprep.subr.mxu0 0.0
        %318 = vmatpush2.xpose.msra.mxu0 0.0
        %319 = vmatprep.subr.mxu0 0.0
        %320 = vmatpush2.xpose.msra.mxu0 0.0
        %321 = vmatprep.subr.mxu0 0.0
        %322 = vmatpush2.xpose.msra.mxu0 0.0
        %323 = vmatprep.subr.mxu0 0.0
        %324 = vmatpush2.xpose.msra.mxu0 0.0
        %325 = vmatprep.subr.mxu0 0.0
        %326 = vmatpush2.xpose.msra.mxu0 0.0
        %327 = vmatprep.subr.mxu0 0.0
        %328 = vmatpush2.xpose.msra.mxu0 0.0
        %329 = vmatprep.subr.mxu0 0.0
        %330 = vmatpush2.xpose.msra.mxu0 0.0
        %331 = vmatprep.subr.mxu0 0.0
        %332 = vmatpush2.xpose.msra.mxu0 0.0
        %333 = vmatprep.subr.mxu0 0.0
        %334 = vmatpush2.xpose.msra.mxu0 0.0
        %335 = vmatprep.subr.mxu0 0.0
        %336 = vmatpush2.xpose.msra.mxu0 0.0
        %337 = vmatprep.subr.mxu0 0.0
        %338 = vmatpush2.xpose.msra.mxu0 0.0
        %339 = vmatprep.subr.mxu0 0.0
        %340 = vmatpush2.xpose.msra.mxu0 0.0
        %341 = vmatprep.subr.mxu0 0.0
        %342 = vmatpush2.xpose.msra.mxu0 0.0
        %343 = vmatprep.subr.mxu0 0.0
        %344 = vmatpush2.xpose.msra.mxu0 0.0
        %345 = vmatprep.mubr.f32.mxu0 %v241
        %346 = vmatmul.mubr.f32.gmra.mxu0 %v240
        %v347 = vpop.f32.mrf.mxu0
        %v348 = vadd.f32 %v279, %v347
        %v349 = vpop.f32.mrf.mxu0
        %350 = vdwg.mxu0
        %v351 = vmax.f32 %v348, 0.0
        %352 = vst [vmem:[%s235] sm:$0xff] %v351
        %s353 = sand.u32 %s121, 1
        %s354 = scalar_lea.sflag [#allocation4], %s353
        %s355 = sand.u32 %s121, 1
        %s356 = smul.addr %s355, 8
        %s357 = scalar_lea.vmem [#allocation7], %s356
        // Predicated region
        $region41: #{tpu_custom_call.1} parent=31 // pred_check
          %p358 = pneg %p131
        $region42: #{tpu_custom_call.1} parent=31 // pred_check_branch
          %360 = sbr.rel (%p358) target = $region44
        $region43: #{tpu_custom_call.1} parent=31 // pred_region
          %s362 = ssub.s32 128, 128
          %363 = vsyncadd %s354, %s362
          %s364 = smul.addr %s25, 2
          %s365 = sadd.s32 %s26, %s364
          %s366 = smul.addr %s365, 128
          %s367 = scalar_lea.hbm %s3, %s366
          %s369 = sshll.u32 %s357, 4
          %s370 = int_to_ptr.vmem [resolvable:$true] %s369
          %372 = dma.vmem_to_hbm [thread:$0]  %s370, 128, %s367, %s354
        $region44: #{tpu_custom_call.1} parent=31 // pred_fallthru
          _
      $region32: #{tpu_custom_call.1} parent=5 // pred_fallthru
        _
      %p373 = scmp.le.s32.totalorder 2, %s16
      // Predicated region
      $region45: #{tpu_custom_call.1} parent=5 // pred_check
        %p374 = pneg %p373
      $region46: #{tpu_custom_call.1} parent=5 // pred_check_branch
        %376 = sbr.rel (%p374) target = $region48
      $region47: #{tpu_custom_call.1} parent=5 // pred_region
        %s377 = ssub.s32 %s16, 2
        // Predicated region
        $region49: #{tpu_custom_call.1} parent=47 // pred_check
          %p378 = pneg %p137
        $region50: #{tpu_custom_call.1} parent=47 // pred_check_branch
          %380 = sbr.rel (%p378) target = $region52
        $region51: #{tpu_custom_call.1} parent=47 // pred_region
          %s381 = sand.u32 %s122, 1
          %s382 = scalar_lea.sflag [#allocation4], %s381
          %s383 = sand.u32 %s122, 1
          %s384 = smul.addr %s383, 8
          %s385 = scalar_lea.vmem [#allocation7], %s384
          %386 = dma.done %s382, 128
        $region52: #{tpu_custom_call.1} parent=47 // pred_fallthru
          _
      $region48: #{tpu_custom_call.1} parent=5 // pred_fallthru
        _
    $region6: #{tpu_custom_call.1} parent=1 // loop_footer
      %s20 = sadd.s32 1, %s16
    $region7: #{tpu_custom_call.1} parent=1 // loop_footer_branch
      %15 = sbr.rel target = $region3
    $region8: #{tpu_custom_call.1} parent=1 // loop_exit
      _
    %387 = vsyncpa [#allocation3], 1
    %s388 = scalar_lea.sflag [#allocation3], 1
    %389 = vsyncpa %s388, 1
    %390 = vsyncpa [#allocation6], 1
    %s391 = scalar_lea.sflag [#allocation6], 1
    %392 = vsyncpa %s391, 1
    %393 = vsyncpa [#allocation4], 1
    %s394 = scalar_lea.sflag [#allocation4], 1
    %395 = vsyncpa %s394, 1

</llo_original>
